<compile_context>
chip_gen: v5e
topology: v5e:2x2
jax: 0.10.0
libtpu: 0.0.40
codegen_flags: <defaults>
</compile_context>

<pallas_src>
import functools

import jax
import jax.numpy as jnp
from jax.experimental import pallas as pl
from jax.experimental.pallas import tpu as pltpu


def _maxout_dropout_kernel(x_ref, w_ref, b_ref, *rest, num_pieces, output_dim,
                           training, drop_p):
    """One batch tile: fused (x @ W + b) -> per-piece max -> (optional) dropout.

    x_ref    : (tile_b, input_dim)                 VMEM
    w_ref    : (input_dim, output_dim*num_pieces)  VMEM (resident, constant block)
    b_ref    : (1, output_dim*num_pieces)          VMEM
    bits_ref : (tile_b, output_dim) uint32         VMEM (training only)
    o_ref    : (tile_b, output_dim)                VMEM
    """
    if training:
        bits_ref, o_ref = rest
    else:
        (o_ref,) = rest

    # Single fused matmul over the full N = output_dim*num_pieces extent keeps
    # the MXU pipeline full (vs. num_pieces small-N pushes).  Feed operands in
    # their native dtype; accumulate in f32.
    z = jnp.dot(x_ref[...], w_ref[...], preferred_element_type=jnp.float32)
    z = z + b_ref[...].astype(jnp.float32)

    # Maxout over pieces: feature index of (piece p, output j) is p*output_dim + j,
    # matching torch's .view(-1, num_pieces, output_dim).max(dim=1).
    # With output_dim % 128 == 0 these are lane-aligned vreg slices -> cheap VPU maxes.
    acc = z[:, 0:output_dim]
    for p in range(1, num_pieces):
        acc = jnp.maximum(acc, z[:, p * output_dim:(p + 1) * output_dim])

    if training:
        # Inverted dropout via integer threshold compare on uniform uint32 bits:
        # keep iff bits >= drop_p * 2^32  (P(keep) = 1 - drop_p), then scale.
        threshold = jnp.uint32(min(int(round(drop_p * (2.0 ** 32))), 2 ** 32 - 1))
        scale = jnp.float32(1.0 / (1.0 - drop_p))
        mult = jnp.where(bits_ref[...] >= threshold, scale, jnp.float32(0.0))
        acc = acc * mult

    o_ref[...] = acc.astype(o_ref.dtype)


def _pick_tile_b(B):
    """Pick a batch tile: big tiles keep the MXU fed on M and amortize the
    ~0.35us per-grid-step overhead; keep >=2 grid steps only when each tile is
    still large (so both v7x TensorCores get meaningful work)."""
    if B > 512:
        for cand in (512, 256, 128, 64, 32, 16, 8):
            if B % cand == 0:
                return cand
        return B
    if B >= 256 and B % 16 == 0:
        return B // 2          # two big tiles -> megacore split on v7x
    return B                   # tiny batch: single full-batch tile, grid=(1,)


def maxout_layer_dropout_forward(x, w, b, *, num_pieces, output_dim,
                                 training=False, drop_p=0.5, rng_key=None,
                                 tile_b=None):
    """x: (B, input_dim), w: (input_dim, output_dim*num_pieces), b: (output_dim*num_pieces,)"""
    B, D = x.shape
    N = output_dim * num_pieces
    assert w.shape == (D, N), (w.shape, (D, N))
    assert b.shape == (N,)

    if tile_b is None:
        tile_b = _pick_tile_b(B)
    assert B % tile_b == 0, "batch must be divisible by tile_b"

    grid = (B // tile_b,)
    b2d = b.reshape(1, N)

    in_specs = [
        # x: tiled over the batch axis.
        pl.BlockSpec((tile_b, D), lambda i: (i, 0)),
        # Weight / bias have constant index_maps, so the pipeline DMAs them once
        # and re-uses the resident copy on subsequent grid steps.
        # TODO(synk): for very large D*N (>~24 MiB) tile the K and/or N axes and
        # single-buffer the weight (pl.Buffered(1)) — v7x only has 64 MiB VMEM.
        pl.BlockSpec((D, N), lambda i: (0, 0)),
        pl.BlockSpec((1, N), lambda i: (0, 0)),
    ]
    args = [x, w, b2d]

    if training:
        # Uniform uint32 bits generated outside the kernel (portable: no
        # TPU-only PRNG primitives); mask + scale are fused in-kernel.
        if rng_key is None:
            rng_key = jax.random.PRNGKey(0)
        bits = jax.random.bits(rng_key, (B, output_dim), dtype=jnp.uint32)
        in_specs.append(pl.BlockSpec((tile_b, output_dim), lambda i: (i, 0)))
        args.append(bits)

    kernel = functools.partial(
        _maxout_dropout_kernel,
        num_pieces=num_pieces, output_dim=output_dim,
        training=training, drop_p=drop_p)

    # Explicit VMEM budget: (conservatively double-buffered) W + bias + x/out/bits tiles.
    isz = lambda a: jnp.dtype(a.dtype).itemsize
    vmem_needed = (2 * w.size * isz(w) + 2 * N * 4
                   + 2 * tile_b * D * isz(x)
                   + 2 * tile_b * output_dim * isz(x)
                   + (2 * tile_b * output_dim * 4 if training else 0))
    vmem_limit = int(min(100 * 2 ** 20, max(vmem_needed + (8 << 20), 32 << 20)))

    return pl.pallas_call(
        kernel,
        out_shape=jax.ShapeDtypeStruct((B, output_dim), x.dtype),
        grid=grid,
        in_specs=in_specs,
        out_specs=pl.BlockSpec((tile_b, output_dim), lambda i: (i, 0)),
        compiler_params=pltpu.CompilerParams(
            dimension_semantics=("parallel",),
            vmem_limit_bytes=vmem_limit,
        ),
    )(*args)


if __name__ == "__main__":
    # Small shapes consistent with the module: Linear(input_dim -> output_dim*num_pieces)
    batch = 16
    input_dim = 32
    output_dim = 128
    num_pieces = 4

    key = jax.random.PRNGKey(0)
    kx, kw, kb, kd = jax.random.split(key, 4)
    x = jax.random.uniform(kx, (batch, input_dim), dtype=jnp.float32)
    # Synthetic params mimicking nn.Linear's uniform(-1/sqrt(fan_in), 1/sqrt(fan_in))
    bound = 1.0 / (input_dim ** 0.5)
    w = jax.random.uniform(kw, (input_dim, output_dim * num_pieces),
                           minval=-bound, maxval=bound, dtype=jnp.float32)
    b = jax.random.uniform(kb, (output_dim * num_pieces,),
                           minval=-bound, maxval=bound, dtype=jnp.float32)

    # Eval mode (dropout is identity): check against pure-JAX reference.
    out_eval = maxout_layer_dropout_forward(
        x, w, b, num_pieces=num_pieces, output_dim=output_dim, training=False)
    out_eval = jax.block_until_ready(out_eval)
    ref = (x @ w + b).reshape(batch, num_pieces, output_dim).max(axis=1)
    assert jnp.allclose(out_eval, ref, atol=1e-4, rtol=1e-4), "mismatch vs reference"

    # Training mode (p=0.5 inverted dropout): each entry is either 0 or 2*maxout.
    out_train = maxout_layer_dropout_forward(
        x, w, b, num_pieces=num_pieces, output_dim=output_dim,
        training=True, drop_p=0.5, rng_key=kd)
    out_train = jax.block_until_ready(out_train)
    assert out_train.shape == (batch, output_dim)
    ok = jnp.isclose(out_train, 0.0) | jnp.isclose(out_train, 2.0 * ref,
                                                   atol=1e-4, rtol=1e-4)
    assert bool(jnp.all(ok)), "dropout output must be 0 or 2x maxout"

    print("KERNEL_OK")
</pallas_src>

<mosaic_0001>
module attributes {stable_mosaic.version = 11 : i64} {
  func.func @_maxout_dropout_kernel(%arg0: i32, %arg1: memref<16x32xf32, #tpu.memory_space<vmem>>, %arg2: memref<32x512xf32, #tpu.memory_space<vmem>>, %arg3: memref<1x512xf32, #tpu.memory_space<vmem>>, %arg4: memref<16x128xf32, #tpu.memory_space<vmem>>) attributes {dimension_semantics = [#tpu.dimension_semantics<parallel>], iteration_bounds = array<i64: 1>, scalar_prefetch = 0 : i64, scratch_operands = 0 : i64, tpu.core_type = #tpu.core_type<tc>, window_params = [{transform_indices = @transform_0, window_bounds = array<i64: 16, 32>}, {pipeline_mode = #tpu.pipeline_mode<synchronous>, transform_indices = @transform_1, window_bounds = array<i64: 32, 512>}, {pipeline_mode = #tpu.pipeline_mode<synchronous>, transform_indices = @transform_2, window_bounds = array<i64: 1, 512>}, {transform_indices = @transform_3, window_bounds = array<i64: 16, 128>}]} {
    %c0 = arith.constant 0 : index
    %c0_0 = arith.constant 0 : index
    %0 = vector.load %arg1[%c0, %c0_0] : memref<16x32xf32, #tpu.memory_space<vmem>>, vector<16x32xf32>
    %c0_1 = arith.constant 0 : index
    %c0_2 = arith.constant 0 : index
    %1 = vector.load %arg2[%c0_1, %c0_2] : memref<32x512xf32, #tpu.memory_space<vmem>>, vector<32x512xf32>
    %cst = arith.constant dense<0.000000e+00> : vector<16x512xf32>
    %2 = tpu.matmul %0, %1, %cst {dimension_numbers = #tpu.dot_dimension_numbers<[1], [0], [0], [1], [0, 0, 1, 1], [], []>} : vector<16x32xf32>, vector<32x512xf32>, vector<16x512xf32> -> vector<16x512xf32>
    %c0_3 = arith.constant 0 : index
    %c0_4 = arith.constant 0 : index
    %3 = vector.load %arg3[%c0_3, %c0_4] : memref<1x512xf32, #tpu.memory_space<vmem>>, vector<1x512xf32>
    %4 = vector.broadcast %3 : vector<1x512xf32> to vector<16x512xf32>
    %5 = arith.addf %2, %4 : vector<16x512xf32>
    %6 = vector.extract_strided_slice %5 {offsets = [0, 0], sizes = [16, 128], strides = [1, 1]} : vector<16x512xf32> to vector<16x128xf32>
    %7 = vector.extract_strided_slice %5 {offsets = [0, 128], sizes = [16, 128], strides = [1, 1]} : vector<16x512xf32> to vector<16x128xf32>
    %8 = arith.maximumf %6, %7 : vector<16x128xf32>
    %9 = vector.extract_strided_slice %5 {offsets = [0, 256], sizes = [16, 128], strides = [1, 1]} : vector<16x512xf32> to vector<16x128xf32>
    %10 = arith.maximumf %8, %9 : vector<16x128xf32>
    %11 = vector.extract_strided_slice %5 {offsets = [0, 384], sizes = [16, 128], strides = [1, 1]} : vector<16x512xf32> to vector<16x128xf32>
    %12 = arith.maximumf %10, %11 : vector<16x128xf32>
    %c0_5 = arith.constant 0 : index
    %c0_6 = arith.constant 0 : index
    %13 = vector.load %arg4[%c0_5, %c0_6] : memref<16x128xf32, #tpu.memory_space<vmem>>, vector<16x128xf32>
    tpu.vector_store %arg4[%c0_5, %c0_6], %12 {strides = array<i32>} : memref<16x128xf32, #tpu.memory_space<vmem>>, vector<16x128xf32>,
    return
  }
  func.func @transform_0(%arg0: i32) -> (i32, i32) {
    %c0_i32 = arith.constant 0 : i32
    %c0_i32_0 = arith.constant 0 : i32
    return %arg0, %c0_i32 : i32, i32
  }
  func.func @transform_1(%arg0: i32) -> (i32, i32) {
    %c0_i32 = arith.constant 0 : i32
    %c0_i32_0 = arith.constant 0 : i32
    %c0_i32_1 = arith.constant 0 : i32
    return %c0_i32, %c0_i32_0 : i32, i32
  }
  func.func @transform_2(%arg0: i32) -> (i32, i32) {
    %c0_i32 = arith.constant 0 : i32
    %c0_i32_0 = arith.constant 0 : i32
    %c0_i32_1 = arith.constant 0 : i32
    return %c0_i32, %c0_i32_0 : i32, i32
  }
  func.func @transform_3(%arg0: i32) -> (i32, i32) {
    %c0_i32 = arith.constant 0 : i32
    %c0_i32_0 = arith.constant 0 : i32
    return %arg0, %c0_i32 : i32, i32
  }
}

</mosaic_0001>

<llo_original>
// kernel: tpu_custom_call.1
$region0: #{tpu_custom_call.1}
  #allocation0 [shape = 'u32[]', space=smem, size = 0x4, offset = 0x4, fixed_abs, tag = 'smem constant byte address 0x4 - core index']
  #allocation1 [shape = 'u32[72,128]{1,0:T(1,128)}', space=vmem, size = 0x9000, scoped, tag = 'internal scratch']
  %s0 = inlined_call_operand.hbm [shape: f32[16,32], index: 0, kind: input, shape index: {}]
  %s1 = inlined_call_operand.hbm [shape: f32[32,512], index: 1, kind: input, shape index: {}]
  %s2 = inlined_call_operand.hbm [shape: f32[1,512], index: 2, kind: input, shape index: {}]
  %s3 = inlined_call_operand.hbm [shape: f32[16,128], index: 3, kind: output, shape index: {}]
  %s4 = sld [smem:[#allocation0]]
  $region34: #{tpu_custom_call.1} parent=0
    _
  %s6 = ssub.s32 1, %s4
  %s7 = scalar_select 0, %s6, %s4
  $region1: #{tpu_custom_call.1} parent=0
    #allocation2 [shape = 'u8[8192]{0}', space=vmem, size = 0x2000, scoped, tag = 'input window, operand 0, single buffered']
    #allocation3 [shape = 's32[1]{0}', space=sflag, size = 0x4, scoped, tag = 'scoped memory for tpu_custom_call.1']
    #allocation4 [shape = 's32[1]{0}', space=sflag, size = 0x4, scoped, tag = 'scoped memory for tpu_custom_call.1']
    #allocation5 [shape = 'u8[65536]{0}', space=vmem, size = 0x10000, scoped, tag = 'input window, operand 1, single buffered']
    #allocation6 [shape = 's32[1]{0}', space=sflag, size = 0x4, scoped, tag = 'scoped memory for tpu_custom_call.1']
    #allocation7 [shape = 'u8[2048]{0}', space=vmem, size = 0x800, scoped, tag = 'input window, operand 2, single buffered']
    #allocation8 [shape = 'u8[8192]{0}', space=vmem, size = 0x2000, scoped, tag = 'output window, operand 0, single buffered']
    %8 = vsyncpa [#allocation3], 0
    %9 = vsyncpa [#allocation6], 0
    %10 = vsyncpa [#allocation4], 0
    // Predicated region
    $region2: #{tpu_custom_call.1} parent=1 // pred_check
      _
    $region3: #{tpu_custom_call.1} parent=1 // pred_check_branch
      %12 = sbr.rel (0) target = $region5
    $region4: #{tpu_custom_call.1} parent=1 // pred_region
      %14 = vsyncadd [#allocation3], 0
      %s15 = sshll.u32 %s0, 4
      %s16 = int_to_ptr.hbm [resolvable:$true] %s15
      %s17 = sshll.u32 [#allocation2], 4
      %s18 = int_to_ptr.vmem [resolvable:$true] %s17
      %23 = dma.hbm_to_vmem [thread:$0]  %s16, 256, %s18, [#allocation3], 128, 128, 8
    $region5: #{tpu_custom_call.1} parent=1 // pred_fallthru
      _
    // Predicated region
    $region6: #{tpu_custom_call.1} parent=1 // pred_check
      _
    $region7: #{tpu_custom_call.1} parent=1 // pred_check_branch
      %25 = sbr.rel (0) target = $region9
    $region8: #{tpu_custom_call.1} parent=1 // pred_region
      %27 = vsyncadd [#allocation6], 0
      %s28 = sshll.u32 %s1, 4
      %s29 = int_to_ptr.hbm [resolvable:$true] %s28
      %s30 = sshll.u32 [#allocation5], 4
      %s31 = int_to_ptr.vmem [resolvable:$true] %s30
      %36 = dma.hbm_to_vmem [thread:$0]  %s29, 2048, %s31, [#allocation6], 512, 512, 32
    $region9: #{tpu_custom_call.1} parent=1 // pred_fallthru
      _
    // Predicated region
    $region10: #{tpu_custom_call.1} parent=1 // pred_check
      _
    $region11: #{tpu_custom_call.1} parent=1 // pred_check_branch
      %38 = sbr.rel (0) target = $region13
    $region12: #{tpu_custom_call.1} parent=1 // pred_region
      %40 = vsyncadd [#allocation6], 0
      %s42 = sshll.u32 %s2, 4
      %s43 = int_to_ptr.hbm [resolvable:$true] %s42
      %s44 = sshll.u32 [#allocation7], 4
      %s45 = int_to_ptr.vmem [resolvable:$true] %s44
      %47 = dma.hbm_to_vmem [thread:$0]  %s43, 64, %s45, [#allocation6]
    $region13: #{tpu_custom_call.1} parent=1 // pred_fallthru
      _
    // Predicated region
    $region14: #{tpu_custom_call.1} parent=1 // pred_check
      _
    $region15: #{tpu_custom_call.1} parent=1 // pred_check_branch
      %49 = sbr.rel (0) target = $region17
    $region16: #{tpu_custom_call.1} parent=1 // pred_region
      %51 = dma.done [#allocation3], 256
    $region17: #{tpu_custom_call.1} parent=1 // pred_fallthru
      _
    // Predicated region
    $region18: #{tpu_custom_call.1} parent=1 // pred_check
      _
    $region19: #{tpu_custom_call.1} parent=1 // pred_check_branch
      %53 = sbr.rel (0) target = $region21
    $region20: #{tpu_custom_call.1} parent=1 // pred_region
      %55 = dma.done [#allocation6], 2048
    $region21: #{tpu_custom_call.1} parent=1 // pred_fallthru
      _
    // Predicated region
    $region22: #{tpu_custom_call.1} parent=1 // pred_check
      _
    $region23: #{tpu_custom_call.1} parent=1 // pred_check_branch
      %57 = sbr.rel (0) target = $region25
    $region24: #{tpu_custom_call.1} parent=1 // pred_region
      %59 = dma.done [#allocation6], 64
    $region25: #{tpu_custom_call.1} parent=1 // pred_fallthru
      _
    %v60 = vld [vmem:[#allocation2] sm:$0xff]
    %v61 = vld [vmem:[#allocation2 + $0x8] sm:$0xff]
    %v62 = vld [vmem:[#allocation5] sm:$0xff]
    %v63 = vld [vmem:[#allocation5 + $0x8] sm:$0xff]
    %v64 = vld [vmem:[#allocation5 + $0x10] sm:$0xff]
    %v65 = vld [vmem:[#allocation5 + $0x18] sm:$0xff]
    %v66 = vld [vmem:[#allocation5 + $0x20] sm:$0xff]
    %v67 = vld [vmem:[#allocation5 + $0x28] sm:$0xff]
    %v68 = vld [vmem:[#allocation5 + $0x30] sm:$0xff]
    %v69 = vld [vmem:[#allocation5 + $0x38] sm:$0xff]
    %v70 = vld [vmem:[#allocation5 + $0x40] sm:$0xff]
    %v71 = vld [vmem:[#allocation5 + $0x48] sm:$0xff]
    %v72 = vld [vmem:[#allocation5 + $0x50] sm:$0xff]
    %v73 = vld [vmem:[#allocation5 + $0x58] sm:$0xff]
    %v74 = vld [vmem:[#allocation5 + $0x60] sm:$0xff]
    %v75 = vld [vmem:[#allocation5 + $0x68] sm:$0xff]
    %v76 = vld [vmem:[#allocation5 + $0x70] sm:$0xff]
    %v77 = vld [vmem:[#allocation5 + $0x78] sm:$0xff]
    %v78 = vld [vmem:[#allocation7] sm:$0xf]
    %v80 = vperm.slane %v78, 0
    %v81 = vperm.slane %v78, 1
    %v82 = vperm.slane %v78, 2
    %v83 = vperm.slane %v78, 3
    %vm88 = vcmask 261120
    %v90 = vsel %vm88, %v60, 0
    %v93 = vsel %vm88, %v61, 0
    %95 = vmatpush.msra.mxu0 0.0
    %96 = vmatpush.msra.mxu0 0.0
    %97 = vmatpush.msra.mxu0 0.0
    %98 = vmatpush.msra.mxu0 0.0
    %99 = vmatpush.msra.mxu0 0.0
    %100 = vmatpush.msra.mxu0 0.0
    %101 = vmatpush.msra.mxu0 0.0
    %102 = vmatpush.msra.mxu0 0.0
    %103 = vmatpush.msra.mxu0 0.0
    %104 = vmatpush.msra.mxu0 0.0
    %105 = vmatpush.msra.mxu0 0.0
    %106 = vmatpush.msra.mxu0 0.0
    %107 = vmatpush.msra.mxu0 %v74
    %108 = vmatpush.msra.mxu0 %v70
    %109 = vmatpush.msra.mxu0 %v66
    %110 = vmatpush.msra.mxu0 %v62
    %111 = vmatmul.f32.gmra.mxu0 %v90
    %v112 = vpop.f32.mrf.mxu0
    %v113 = vadd.f32 %v80, %v112
    %114 = vmatmul.f32.gmra.mxu0 %v93
    %v115 = vpop.f32.mrf.mxu0
    %v116 = vadd.f32 %v80, %v115
    %117 = vdwg.mxu0
    %118 = vmatpush.msra.mxu0 0.0
    %119 = vmatpush.msra.mxu0 0.0
    %120 = vmatpush.msra.mxu0 0.0
    %121 = vmatpush.msra.mxu0 0.0
    %122 = vmatpush.msra.mxu0 0.0
    %123 = vmatpush.msra.mxu0 0.0
    %124 = vmatpush.msra.mxu0 0.0
    %125 = vmatpush.msra.mxu0 0.0
    %126 = vmatpush.msra.mxu0 0.0
    %127 = vmatpush.msra.mxu0 0.0
    %128 = vmatpush.msra.mxu0 0.0
    %129 = vmatpush.msra.mxu0 0.0
    %130 = vmatpush.msra.mxu0 %v75
    %131 = vmatpush.msra.mxu0 %v71
    %132 = vmatpush.msra.mxu0 %v67
    %133 = vmatpush.msra.mxu0 %v63
    %134 = vmatmul.f32.gmra.mxu0 %v90
    %v135 = vpop.f32.mrf.mxu0
    %v136 = vadd.f32 %v81, %v135
    %137 = vmatmul.f32.gmra.mxu0 %v93
    %v138 = vpop.f32.mrf.mxu0
    %v139 = vadd.f32 %v81, %v138
    %140 = vdwg.mxu0
    %141 = vmatpush.msra.mxu0 0.0
    %142 = vmatpush.msra.mxu0 0.0
    %143 = vmatpush.msra.mxu0 0.0
    %144 = vmatpush.msra.mxu0 0.0
    %145 = vmatpush.msra.mxu0 0.0
    %146 = vmatpush.msra.mxu0 0.0
    %147 = vmatpush.msra.mxu0 0.0
    %148 = vmatpush.msra.mxu0 0.0
    %149 = vmatpush.msra.mxu0 0.0
    %150 = vmatpush.msra.mxu0 0.0
    %151 = vmatpush.msra.mxu0 0.0
    %152 = vmatpush.msra.mxu0 0.0
    %153 = vmatpush.msra.mxu0 %v76
    %154 = vmatpush.msra.mxu0 %v72
    %155 = vmatpush.msra.mxu0 %v68
    %156 = vmatpush.msra.mxu0 %v64
    %157 = vmatmul.f32.gmra.mxu0 %v90
    %v158 = vpop.f32.mrf.mxu0
    %v159 = vadd.f32 %v82, %v158
    %160 = vmatmul.f32.gmra.mxu0 %v93
    %v161 = vpop.f32.mrf.mxu0
    %v162 = vadd.f32 %v82, %v161
    %163 = vdwg.mxu0
    %164 = vmatpush.msra.mxu0 0.0
    %165 = vmatpush.msra.mxu0 0.0
    %166 = vmatpush.msra.mxu0 0.0
    %167 = vmatpush.msra.mxu0 0.0
    %168 = vmatpush.msra.mxu0 0.0
    %169 = vmatpush.msra.mxu0 0.0
    %170 = vmatpush.msra.mxu0 0.0
    %171 = vmatpush.msra.mxu0 0.0
    %172 = vmatpush.msra.mxu0 0.0
    %173 = vmatpush.msra.mxu0 0.0
    %174 = vmatpush.msra.mxu0 0.0
    %175 = vmatpush.msra.mxu0 0.0
    %176 = vmatpush.msra.mxu0 %v77
    %177 = vmatpush.msra.mxu0 %v73
    %178 = vmatpush.msra.mxu0 %v69
    %179 = vmatpush.msra.mxu0 %v65
    %180 = vmatmul.f32.gmra.mxu0 %v90
    %v181 = vpop.f32.mrf.mxu0
    %v182 = vadd.f32 %v83, %v181
    %183 = vmatmul.f32.gmra.mxu0 %v93
    %v184 = vpop.f32.mrf.mxu0
    %v185 = vadd.f32 %v83, %v184
    %186 = vdwg.mxu0
    %v187 = vmax.f32 %v113, %v136
    %v188 = vmax.f32 %v116, %v139
    %v189 = vmax.f32 %v187, %v159
    %v190 = vmax.f32 %v188, %v162
    %v191 = vmax.f32 %v189, %v182
    %v192 = vmax.f32 %v190, %v185
    %193 = vst [vmem:[#allocation8] sm:$0xff] %v191
    %194 = vst [vmem:[#allocation8 + $0x8] sm:$0xff] %v192
    // Predicated region
    $region26: #{tpu_custom_call.1} parent=1 // pred_check
      _
    $region27: #{tpu_custom_call.1} parent=1 // pred_check_branch
      %196 = sbr.rel (0) target = $region29
    $region28: #{tpu_custom_call.1} parent=1 // pred_region
      %198 = vsyncadd [#allocation4], 0
      %s199 = sshll.u32 [#allocation8], 4
      %s200 = int_to_ptr.vmem [resolvable:$true] %s199
      %s201 = sshll.u32 %s3, 4
      %s202 = int_to_ptr.hbm [resolvable:$true] %s201
      %207 = dma.vmem_to_hbm [thread:$0]  %s200, 256, %s202, [#allocation4], 128, 128, 8
    $region29: #{tpu_custom_call.1} parent=1 // pred_fallthru
      _
    // Predicated region
    $region30: #{tpu_custom_call.1} parent=1 // pred_check
      _
    $region31: #{tpu_custom_call.1} parent=1 // pred_check_branch
      %209 = sbr.rel (0) target = $region33
    $region32: #{tpu_custom_call.1} parent=1 // pred_region
      %211 = dma.done [#allocation4], 256
    $region33: #{tpu_custom_call.1} parent=1 // pred_fallthru
      _
    %212 = vsyncpa [#allocation3], 1
    %213 = vsyncpa [#allocation6], 1
    %214 = vsyncpa [#allocation4], 1

</llo_original>
